<compile_context>
chip_gen: v5e
topology: v5e:2x2
jax: 0.10.0
libtpu: 0.0.40
codegen_flags: <defaults>
</compile_context>

<pallas_src>
import functools

import jax
import jax.numpy as jnp
from jax.experimental import pallas as pl
from jax.experimental.pallas import tpu as pltpu

HIDDEN_SIZE = 98
INPUT_SIZE = 24
NUM_CLASSES = 10

LANE = 128            # lane-dense padded width for hidden dims
DEFAULT_TB = 2048     # batch tile (rows per grid step); sweepable


def _round_up(n, m):
    return ((n + m - 1) // m) * m


def _mlp_kernel(x_ref, w1_ref, b1_ref, w2_ref, b2_ref,
                w3_ref, b3_ref, w4_ref, b4_ref, o_ref):
    # In-kernel bf16 cast of x (x is kept f32 in HBM; no wrapper-side pass).
    x = x_ref[...].astype(jnp.bfloat16)

    # fc1 + ReLU   (bf16 MXU inputs, f32 accumulation, f32 elementwise)
    h1 = jnp.dot(x, w1_ref[...],
                 preferred_element_type=jnp.float32) + b1_ref[...]
    h1 = jnp.maximum(h1, 0.0)
    # dropout(p=0.25) in eval mode (training=False) == identity

    # fc2 + ReLU
    h2 = jnp.dot(h1.astype(jnp.bfloat16), w2_ref[...],
                 preferred_element_type=jnp.float32) + b2_ref[...]
    h2 = jnp.maximum(h2, 0.0)

    # fc3 + ReLU
    h3 = jnp.dot(h2.astype(jnp.bfloat16), w3_ref[...],
                 preferred_element_type=jnp.float32) + b3_ref[...]
    h3 = jnp.maximum(h3, 0.0)

    # fc4 (no activation); only the real NUM_CLASSES columns are stored.
    out = jnp.dot(h3.astype(jnp.bfloat16), w4_ref[...],
                  preferred_element_type=jnp.float32) + b4_ref[...]
    o_ref[...] = out.astype(o_ref.dtype)


def _pad_params(params):
    """Zero-pad hidden widths to 128 lanes and cast weights to bf16.

    Padded weight columns and bias entries are zero, so padded activation
    columns are ReLU(0) = 0 and padded weight rows multiply zeros: the math
    on the real columns is unchanged.  w4 keeps its real NUM_CLASSES output
    width so the kernel writes a narrow [TB, NUM_CLASSES] output block.
    """
    def pad_w(w, rows, cols):
        w = jnp.pad(w, ((0, rows - w.shape[0]), (0, cols - w.shape[1])))
        return w.astype(jnp.bfloat16)

    def pad_b(b, cols):
        return jnp.pad(b, ((0, 0), (0, cols - b.shape[1]))).astype(jnp.float32)

    w1 = pad_w(params["w1"], INPUT_SIZE, LANE)        # [24, 128]
    w2 = pad_w(params["w2"], LANE, LANE)               # [128, 128]
    w3 = pad_w(params["w3"], LANE, LANE)               # [128, 128]
    w4 = pad_w(params["w4"], LANE, NUM_CLASSES)        # [128, 10]
    b1 = pad_b(params["b1"], LANE)                     # [1, 128]
    b2 = pad_b(params["b2"], LANE)
    b3 = pad_b(params["b3"], LANE)
    b4 = params["b4"].astype(jnp.float32)              # [1, 10]
    return w1, b1, w2, b2, w3, b3, w4, b4


@functools.partial(jax.jit, static_argnames=("tb",))
def neural_net_forward(x, params, tb=DEFAULT_TB):
    """x: [B, INPUT_SIZE] float32; params: dict of unpadded weights/biases."""
    batch = x.shape[0]

    # Batch tile: multiple of 16 (bf16 sublane packing); never collapse a
    # medium/large batch to a single grid step (keeps v7x's 2nd TC busy).
    half = _round_up(max(1, (batch + 1) // 2), 16)
    tb_eff = max(16, min(tb, half))
    b_pad = _round_up(batch, tb_eff)

    if b_pad != batch:
        # Small residual pad only (f32, no dtype cast of the whole batch).
        x = jnp.pad(x, ((0, b_pad - batch), (0, 0)))

    w1, b1, w2, b2, w3, b3, w4, b4 = _pad_params(params)

    # Resident operands: constant index_map -> DMA'd once, stay in VMEM.
    def resident(shape):
        return pl.BlockSpec(shape, lambda i: (0, 0))

    out_padded = pl.pallas_call(
        _mlp_kernel,
        out_shape=jax.ShapeDtypeStruct((b_pad, NUM_CLASSES), jnp.float32),
        grid=(b_pad // tb_eff,),
        in_specs=[
            pl.BlockSpec((tb_eff, INPUT_SIZE), lambda i: (i, 0)),  # x tile (f32)
            resident(w1.shape), resident(b1.shape),
            resident(w2.shape), resident(b2.shape),
            resident(w3.shape), resident(b3.shape),
            resident(w4.shape), resident(b4.shape),
        ],
        out_specs=pl.BlockSpec((tb_eff, NUM_CLASSES), lambda i: (i, 0)),
        compiler_params=pltpu.CompilerParams(
            dimension_semantics=("parallel",),      # megacore sharding on v7x
            vmem_limit_bytes=32 * 1024 * 1024,       # safe on v5e/v6e/v7x
        ),
    )(x, w1, b1, w2, b2, w3, b3, w4, b4)

    return out_padded[:batch] if b_pad != batch else out_padded


def init_params(key):
    """Deterministic synthetic parameters matching nn.Linear shapes.

    PyTorch nn.Linear(in, out) stores weight [out, in]; we store the
    transpose [in, out] so the kernel computes x @ W + b directly.
    Init mimics PyTorch's U(-1/sqrt(in), 1/sqrt(in)).
    """
    dims = [
        (INPUT_SIZE, HIDDEN_SIZE),          # fc1
        (HIDDEN_SIZE, HIDDEN_SIZE),         # fc2
        (HIDDEN_SIZE, HIDDEN_SIZE // 2),    # fc3
        (HIDDEN_SIZE // 2, NUM_CLASSES),    # fc4
    ]
    params = {}
    for i, (fan_in, fan_out) in enumerate(dims, start=1):
        key, kw, kb = jax.random.split(key, 3)
        bound = 1.0 / (fan_in ** 0.5)
        params[f"w{i}"] = jax.random.uniform(
            kw, (fan_in, fan_out), jnp.float32, -bound, bound)
        params[f"b{i}"] = jax.random.uniform(
            kb, (1, fan_out), jnp.float32, -bound, bound)
    return params


def reference_forward_f32(x, params):
    h = jnp.maximum(x @ params["w1"] + params["b1"], 0.0)
    h = jnp.maximum(h @ params["w2"] + params["b2"], 0.0)
    h = jnp.maximum(h @ params["w3"] + params["b3"], 0.0)
    return h @ params["w4"] + params["b4"]


def reference_forward_bf16(x, params):
    """Mimics the kernel's numerics (bf16 matmul inputs, f32 accumulation)."""
    def lin(a, w, b):
        return jnp.dot(a.astype(jnp.bfloat16), w.astype(jnp.bfloat16),
                       preferred_element_type=jnp.float32) + b
    h = jnp.maximum(lin(x, params["w1"], params["b1"]), 0.0)
    h = jnp.maximum(lin(h, params["w2"], params["b2"]), 0.0)
    h = jnp.maximum(lin(h, params["w3"], params["b3"]), 0.0)
    return lin(h, params["w4"], params["b4"])


if __name__ == "__main__":
    key = jax.random.PRNGKey(0)
    key, kx = jax.random.split(key)
    batch = 8
    x = jax.random.normal(kx, (batch, INPUT_SIZE), jnp.float32)
    params = init_params(key)

    out = neural_net_forward(x, params)
    out = jax.block_until_ready(out)
    assert out.shape == (batch, NUM_CLASSES)

    # Tight check vs a reference with identical (bf16-input) numerics.
    ref_bf16 = reference_forward_bf16(x, params)
    assert jnp.allclose(out, ref_bf16, atol=2e-3, rtol=2e-3)

    # Loose check vs the pure-f32 PyTorch-equivalent math (bf16 cast error).
    ref_f32 = reference_forward_f32(x, params)
    assert jnp.allclose(out, ref_f32, atol=5e-2, rtol=5e-2)

    # Also exercise a batch that spans multiple grid steps + ragged padding.
    key, kx2 = jax.random.split(key)
    x_big = jax.random.normal(kx2, (3000, INPUT_SIZE), jnp.float32)
    out_big = jax.block_until_ready(neural_net_forward(x_big, params))
    assert out_big.shape == (3000, NUM_CLASSES)
    ref_big = reference_forward_bf16(x_big, params)
    assert jnp.allclose(out_big, ref_big, atol=2e-3, rtol=2e-3)

    print("KERNEL_OK")
</pallas_src>

<mosaic_0001>
module attributes {stable_mosaic.version = 11 : i64} {
  func.func @_mlp_kernel(%arg0: i32, %arg1: memref<16x24xf32, #tpu.memory_space<vmem>>, %arg2: memref<24x128xbf16, #tpu.memory_space<vmem>>, %arg3: memref<1x128xf32, #tpu.memory_space<vmem>>, %arg4: memref<128x128xbf16, #tpu.memory_space<vmem>>, %arg5: memref<1x128xf32, #tpu.memory_space<vmem>>, %arg6: memref<128x128xbf16, #tpu.memory_space<vmem>>, %arg7: memref<1x128xf32, #tpu.memory_space<vmem>>, %arg8: memref<128x10xbf16, #tpu.memory_space<vmem>>, %arg9: memref<1x10xf32, #tpu.memory_space<vmem>>, %arg10: memref<16x10xf32, #tpu.memory_space<vmem>>) attributes {dimension_semantics = [#tpu.dimension_semantics<parallel>], iteration_bounds = array<i64: 1>, scalar_prefetch = 0 : i64, scratch_operands = 0 : i64, tpu.core_type = #tpu.core_type<tc>, window_params = [{transform_indices = @transform_0, window_bounds = array<i64: 16, 24>}, {pipeline_mode = #tpu.pipeline_mode<synchronous>, transform_indices = @transform_1, window_bounds = array<i64: 24, 128>}, {pipeline_mode = #tpu.pipeline_mode<synchronous>, transform_indices = @transform_2, window_bounds = array<i64: 1, 128>}, {pipeline_mode = #tpu.pipeline_mode<synchronous>, transform_indices = @transform_3, window_bounds = array<i64: 128, 128>}, {pipeline_mode = #tpu.pipeline_mode<synchronous>, transform_indices = @transform_4, window_bounds = array<i64: 1, 128>}, {pipeline_mode = #tpu.pipeline_mode<synchronous>, transform_indices = @transform_5, window_bounds = array<i64: 128, 128>}, {pipeline_mode = #tpu.pipeline_mode<synchronous>, transform_indices = @transform_6, window_bounds = array<i64: 1, 128>}, {pipeline_mode = #tpu.pipeline_mode<synchronous>, transform_indices = @transform_7, window_bounds = array<i64: 128, 10>}, {pipeline_mode = #tpu.pipeline_mode<synchronous>, transform_indices = @transform_8, window_bounds = array<i64: 1, 10>}, {transform_indices = @transform_9, window_bounds = array<i64: 16, 10>}]} {
    %c0 = arith.constant 0 : index
    %c0_0 = arith.constant 0 : index
    %0 = vector.load %arg1[%c0, %c0_0] : memref<16x24xf32, #tpu.memory_space<vmem>>, vector<16x24xf32>
    %1 = arith.truncf %0 : vector<16x24xf32> to vector<16x24xbf16>
    %c0_1 = arith.constant 0 : index
    %c0_2 = arith.constant 0 : index
    %2 = vector.load %arg2[%c0_1, %c0_2] : memref<24x128xbf16, #tpu.memory_space<vmem>>, vector<24x128xbf16>
    %cst = arith.constant dense<0.000000e+00> : vector<16x128xf32>
    %3 = tpu.matmul %1, %2, %cst {dimension_numbers = #tpu.dot_dimension_numbers<[1], [0], [0], [1], [0, 0, 1, 1], [], []>} : vector<16x24xbf16>, vector<24x128xbf16>, vector<16x128xf32> -> vector<16x128xf32>
    %c0_3 = arith.constant 0 : index
    %c0_4 = arith.constant 0 : index
    %4 = vector.load %arg3[%c0_3, %c0_4] : memref<1x128xf32, #tpu.memory_space<vmem>>, vector<1x128xf32>
    %5 = vector.broadcast %4 : vector<1x128xf32> to vector<16x128xf32>
    %6 = arith.addf %3, %5 : vector<16x128xf32>
    %cst_5 = arith.constant 0.000000e+00 : f32
    %7 = vector.broadcast %cst_5 : f32 to vector<16x128xf32>
    %8 = arith.maximumf %6, %7 : vector<16x128xf32>
    %9 = arith.truncf %8 : vector<16x128xf32> to vector<16x128xbf16>
    %c0_6 = arith.constant 0 : index
    %c0_7 = arith.constant 0 : index
    %10 = vector.load %arg4[%c0_6, %c0_7] : memref<128x128xbf16, #tpu.memory_space<vmem>>, vector<128x128xbf16>
    %cst_8 = arith.constant dense<0.000000e+00> : vector<16x128xf32>
    %11 = tpu.matmul %9, %10, %cst_8 {dimension_numbers = #tpu.dot_dimension_numbers<[1], [0], [0], [1], [0, 0, 1, 1], [], []>} : vector<16x128xbf16>, vector<128x128xbf16>, vector<16x128xf32> -> vector<16x128xf32>
    %c0_9 = arith.constant 0 : index
    %c0_10 = arith.constant 0 : index
    %12 = vector.load %arg5[%c0_9, %c0_10] : memref<1x128xf32, #tpu.memory_space<vmem>>, vector<1x128xf32>
    %13 = vector.broadcast %12 : vector<1x128xf32> to vector<16x128xf32>
    %14 = arith.addf %11, %13 : vector<16x128xf32>
    %cst_11 = arith.constant 0.000000e+00 : f32
    %15 = vector.broadcast %cst_11 : f32 to vector<16x128xf32>
    %16 = arith.maximumf %14, %15 : vector<16x128xf32>
    %17 = arith.truncf %16 : vector<16x128xf32> to vector<16x128xbf16>
    %c0_12 = arith.constant 0 : index
    %c0_13 = arith.constant 0 : index
    %18 = vector.load %arg6[%c0_12, %c0_13] : memref<128x128xbf16, #tpu.memory_space<vmem>>, vector<128x128xbf16>
    %cst_14 = arith.constant dense<0.000000e+00> : vector<16x128xf32>
    %19 = tpu.matmul %17, %18, %cst_14 {dimension_numbers = #tpu.dot_dimension_numbers<[1], [0], [0], [1], [0, 0, 1, 1], [], []>} : vector<16x128xbf16>, vector<128x128xbf16>, vector<16x128xf32> -> vector<16x128xf32>
    %c0_15 = arith.constant 0 : index
    %c0_16 = arith.constant 0 : index
    %20 = vector.load %arg7[%c0_15, %c0_16] : memref<1x128xf32, #tpu.memory_space<vmem>>, vector<1x128xf32>
    %21 = vector.broadcast %20 : vector<1x128xf32> to vector<16x128xf32>
    %22 = arith.addf %19, %21 : vector<16x128xf32>
    %cst_17 = arith.constant 0.000000e+00 : f32
    %23 = vector.broadcast %cst_17 : f32 to vector<16x128xf32>
    %24 = arith.maximumf %22, %23 : vector<16x128xf32>
    %25 = arith.truncf %24 : vector<16x128xf32> to vector<16x128xbf16>
    %c0_18 = arith.constant 0 : index
    %c0_19 = arith.constant 0 : index
    %26 = vector.load %arg8[%c0_18, %c0_19] : memref<128x10xbf16, #tpu.memory_space<vmem>>, vector<128x10xbf16>
    %cst_20 = arith.constant dense<0.000000e+00> : vector<16x10xf32>
    %27 = tpu.matmul %25, %26, %cst_20 {dimension_numbers = #tpu.dot_dimension_numbers<[1], [0], [0], [1], [0, 0, 1, 1], [], []>} : vector<16x128xbf16>, vector<128x10xbf16>, vector<16x10xf32> -> vector<16x10xf32>
    %c0_21 = arith.constant 0 : index
    %c0_22 = arith.constant 0 : index
    %28 = vector.load %arg9[%c0_21, %c0_22] : memref<1x10xf32, #tpu.memory_space<vmem>>, vector<1x10xf32>
    %29 = vector.broadcast %28 : vector<1x10xf32> to vector<16x10xf32>
    %30 = arith.addf %27, %29 : vector<16x10xf32>
    %c0_23 = arith.constant 0 : index
    %c0_24 = arith.constant 0 : index
    %31 = vector.load %arg10[%c0_23, %c0_24] : memref<16x10xf32, #tpu.memory_space<vmem>>, vector<16x10xf32>
    tpu.vector_store %arg10[%c0_23, %c0_24], %30 {strides = array<i32>} : memref<16x10xf32, #tpu.memory_space<vmem>>, vector<16x10xf32>,
    return
  }
  func.func @transform_0(%arg0: i32) -> (i32, i32) {
    %c0_i32 = arith.constant 0 : i32
    %c0_i32_0 = arith.constant 0 : i32
    return %arg0, %c0_i32 : i32, i32
  }
  func.func @transform_1(%arg0: i32) -> (i32, i32) {
    %c0_i32 = arith.constant 0 : i32
    %c0_i32_0 = arith.constant 0 : i32
    %c0_i32_1 = arith.constant 0 : i32
    return %c0_i32, %c0_i32_0 : i32, i32
  }
  func.func @transform_2(%arg0: i32) -> (i32, i32) {
    %c0_i32 = arith.constant 0 : i32
    %c0_i32_0 = arith.constant 0 : i32
    %c0_i32_1 = arith.constant 0 : i32
    return %c0_i32, %c0_i32_0 : i32, i32
  }
  func.func @transform_3(%arg0: i32) -> (i32, i32) {
    %c0_i32 = arith.constant 0 : i32
    %c0_i32_0 = arith.constant 0 : i32
    %c0_i32_1 = arith.constant 0 : i32
    return %c0_i32, %c0_i32_0 : i32, i32
  }
  func.func @transform_4(%arg0: i32) -> (i32, i32) {
    %c0_i32 = arith.constant 0 : i32
    %c0_i32_0 = arith.constant 0 : i32
    %c0_i32_1 = arith.constant 0 : i32
    return %c0_i32, %c0_i32_0 : i32, i32
  }
  func.func @transform_5(%arg0: i32) -> (i32, i32) {
    %c0_i32 = arith.constant 0 : i32
    %c0_i32_0 = arith.constant 0 : i32
    %c0_i32_1 = arith.constant 0 : i32
    return %c0_i32, %c0_i32_0 : i32, i32
  }
  func.func @transform_6(%arg0: i32) -> (i32, i32) {
    %c0_i32 = arith.constant 0 : i32
    %c0_i32_0 = arith.constant 0 : i32
    %c0_i32_1 = arith.constant 0 : i32
    return %c0_i32, %c0_i32_0 : i32, i32
  }
  func.func @transform_7(%arg0: i32) -> (i32, i32) {
    %c0_i32 = arith.constant 0 : i32
    %c0_i32_0 = arith.constant 0 : i32
    %c0_i32_1 = arith.constant 0 : i32
    return %c0_i32, %c0_i32_0 : i32, i32
  }
  func.func @transform_8(%arg0: i32) -> (i32, i32) {
    %c0_i32 = arith.constant 0 : i32
    %c0_i32_0 = arith.constant 0 : i32
    %c0_i32_1 = arith.constant 0 : i32
    return %c0_i32, %c0_i32_0 : i32, i32
  }
  func.func @transform_9(%arg0: i32) -> (i32, i32) {
    %c0_i32 = arith.constant 0 : i32
    %c0_i32_0 = arith.constant 0 : i32
    return %arg0, %c0_i32 : i32, i32
  }
}

</mosaic_0001>

<llo_original>
// kernel: neural_net_forward.1
$region0: #{neural_net_forward.1}
  #allocation0 [shape = 'u32[]', space=smem, size = 0x4, offset = 0x4, fixed_abs, tag = 'smem constant byte address 0x4 - core index']
  #allocation1 [shape = 'u32[72,128]{1,0:T(1,128)}', space=vmem, size = 0x9000, scoped, tag = 'internal scratch']
  %s0 = inlined_call_operand.vmem [shape: f32[16,24], index: 0, kind: input, shape index: {}]
  %s1 = inlined_call_operand.vmem [shape: bf16[24,128], index: 1, kind: input, shape index: {}]
  %s2 = inlined_call_operand.vmem [shape: f32[1,128], index: 2, kind: input, shape index: {}]
  %s3 = inlined_call_operand.vmem [shape: bf16[128,128], index: 3, kind: input, shape index: {}]
  %s4 = inlined_call_operand.vmem [shape: f32[1,128], index: 4, kind: input, shape index: {}]
  %s5 = inlined_call_operand.vmem [shape: bf16[128,128], index: 5, kind: input, shape index: {}]
  %s6 = inlined_call_operand.vmem [shape: f32[1,128], index: 6, kind: input, shape index: {}]
  %s7 = inlined_call_operand.vmem [shape: bf16[128,10], index: 7, kind: input, shape index: {}]
  %s8 = inlined_call_operand.vmem [shape: f32[1,10], index: 8, kind: input, shape index: {}]
  %s9 = inlined_call_operand.vmem [shape: f32[16,10], index: 9, kind: output, shape index: {}]
  %s10 = sld [smem:[#allocation0]]
  $region46: #{neural_net_forward.1} parent=0
    _
  %s12 = ssub.s32 1, %s10
  %s13 = scalar_select 0, %s12, %s10
  // Predicated region
  $region2: #{neural_net_forward.1} parent=0 // pred_check
    _
  $region3: #{neural_net_forward.1} parent=0 // pred_check_branch
    %15 = sbr.rel (0) target = $region5
  $region4: #{neural_net_forward.1} parent=0 // pred_region
    _
  $region5: #{neural_net_forward.1} parent=0 // pred_fallthru
    _
  // Predicated region
  $region6: #{neural_net_forward.1} parent=0 // pred_check
    _
  $region7: #{neural_net_forward.1} parent=0 // pred_check_branch
    %17 = sbr.rel (0) target = $region9
  $region8: #{neural_net_forward.1} parent=0 // pred_region
    _
  $region9: #{neural_net_forward.1} parent=0 // pred_fallthru
    _
  // Predicated region
  $region10: #{neural_net_forward.1} parent=0 // pred_check
    _
  $region11: #{neural_net_forward.1} parent=0 // pred_check_branch
    %19 = sbr.rel (0) target = $region13
  $region12: #{neural_net_forward.1} parent=0 // pred_region
    _
  $region13: #{neural_net_forward.1} parent=0 // pred_fallthru
    _
  // Predicated region
  $region14: #{neural_net_forward.1} parent=0 // pred_check
    _
  $region15: #{neural_net_forward.1} parent=0 // pred_check_branch
    %21 = sbr.rel (0) target = $region17
  $region16: #{neural_net_forward.1} parent=0 // pred_region
    _
  $region17: #{neural_net_forward.1} parent=0 // pred_fallthru
    _
  // Predicated region
  $region18: #{neural_net_forward.1} parent=0 // pred_check
    _
  $region19: #{neural_net_forward.1} parent=0 // pred_check_branch
    %23 = sbr.rel (0) target = $region21
  $region20: #{neural_net_forward.1} parent=0 // pred_region
    _
  $region21: #{neural_net_forward.1} parent=0 // pred_fallthru
    _
  // Predicated region
  $region22: #{neural_net_forward.1} parent=0 // pred_check
    _
  $region23: #{neural_net_forward.1} parent=0 // pred_check_branch
    %25 = sbr.rel (0) target = $region25
  $region24: #{neural_net_forward.1} parent=0 // pred_region
    _
  $region25: #{neural_net_forward.1} parent=0 // pred_fallthru
    _
  // Predicated region
  $region26: #{neural_net_forward.1} parent=0 // pred_check
    _
  $region27: #{neural_net_forward.1} parent=0 // pred_check_branch
    %27 = sbr.rel (0) target = $region29
  $region28: #{neural_net_forward.1} parent=0 // pred_region
    _
  $region29: #{neural_net_forward.1} parent=0 // pred_fallthru
    _
  // Predicated region
  $region30: #{neural_net_forward.1} parent=0 // pred_check
    _
  $region31: #{neural_net_forward.1} parent=0 // pred_check_branch
    %29 = sbr.rel (0) target = $region33
  $region32: #{neural_net_forward.1} parent=0 // pred_region
    _
  $region33: #{neural_net_forward.1} parent=0 // pred_fallthru
    _
  // Predicated region
  $region34: #{neural_net_forward.1} parent=0 // pred_check
    _
  $region35: #{neural_net_forward.1} parent=0 // pred_check_branch
    %31 = sbr.rel (0) target = $region37
  $region36: #{neural_net_forward.1} parent=0 // pred_region
    _
  $region37: #{neural_net_forward.1} parent=0 // pred_fallthru
    _
  %v33 = vld [vmem:[%s0] sm:$0xff]
  %v34 = vld [vmem:[%s0 + $0x8] sm:$0xff]
  %v35 = vpack.c.bf16 %v34, %v33
  %v36 = vld [vmem:[%s1] sm:$0xf]
  %v37 = vld [vmem:[%s1 + $0x4] sm:$0xf]
  %v38 = vld [vmem:[%s1 + $0x8] sm:$0xf]
  %v39 = vld [vmem:[%s2] sm:$0x1]
  %v41 = vperm.slane %v39, 0
  %v46 = vunpack.c.l.b16 %v36
  %v47 = vunpack.c.l.b16 %v37
  %v48 = vunpack.c.l.b16 %v38
  %v49 = vpack.c.b16 %v47, %v46
  %v50 = vpack.c.b16 %v48, %v48
  %vm52 = vcmask 195584
  %v54 = vsel %vm52, %v35, 0
  %vm56 = vcmask 1043456
  %v58 = vsel %vm56, %v50, 0
  %60 = vmatpush.bf16.msra.mxu0 0
  %61 = vmatpush.bf16.msra.mxu0 0
  %62 = vmatpush.bf16.msra.mxu0 0
  %63 = vmatpush.bf16.msra.mxu0 0
  %64 = vmatpush.bf16.msra.mxu0 0
  %65 = vmatpush.bf16.msra.mxu0 0
  %66 = vmatpush.bf16.msra.mxu0 %v58
  %67 = vmatpush.bf16.msra.mxu0 %v49
  %68 = vmatmul.bf16.gmra.mxu0 %v54
  %v69 = vpop.f32.mrf.mxu0
  %v70 = vadd.f32 %v41, %v69
  %v71 = vpop.f32.mrf.mxu0
  %v72 = vadd.f32 %v41, %v71
  %73 = vdwg.mxu0
  %v74 = vmax.f32 %v70, 0.0
  %v75 = vmax.f32 %v72, 0.0
  %v76 = vpack.c.bf16 %v75, %v74
  %v77 = vld [vmem:[%s3] sm:$0xf]
  %v78 = vld [vmem:[%s3 + $0x4] sm:$0xf]
  %v79 = vld [vmem:[%s3 + $0x8] sm:$0xf]
  %v80 = vld [vmem:[%s3 + $0xc] sm:$0xf]
  %v81 = vld [vmem:[%s3 + $0x10] sm:$0xf]
  %v82 = vld [vmem:[%s3 + $0x14] sm:$0xf]
  %v83 = vld [vmem:[%s3 + $0x18] sm:$0xf]
  %v84 = vld [vmem:[%s3 + $0x1c] sm:$0xf]
  %v85 = vld [vmem:[%s3 + $0x20] sm:$0xf]
  %v86 = vld [vmem:[%s3 + $0x24] sm:$0xf]
  %v87 = vld [vmem:[%s3 + $0x28] sm:$0xf]
  %v88 = vld [vmem:[%s3 + $0x2c] sm:$0xf]
  %v89 = vld [vmem:[%s3 + $0x30] sm:$0xf]
  %v90 = vld [vmem:[%s3 + $0x34] sm:$0xf]
  %v91 = vld [vmem:[%s3 + $0x38] sm:$0xf]
  %v92 = vld [vmem:[%s3 + $0x3c] sm:$0xf]
  %v93 = vld [vmem:[%s4] sm:$0x1]
  %v95 = vperm.slane %v93, 0
  %v113 = vunpack.c.l.b16 %v77
  %v114 = vunpack.c.l.b16 %v78
  %v115 = vunpack.c.l.b16 %v79
  %v116 = vunpack.c.l.b16 %v80
  %v117 = vunpack.c.l.b16 %v81
  %v118 = vunpack.c.l.b16 %v82
  %v119 = vunpack.c.l.b16 %v83
  %v120 = vunpack.c.l.b16 %v84
  %v121 = vunpack.c.l.b16 %v85
  %v122 = vunpack.c.l.b16 %v86
  %v123 = vunpack.c.l.b16 %v87
  %v124 = vunpack.c.l.b16 %v88
  %v125 = vunpack.c.l.b16 %v89
  %v126 = vunpack.c.l.b16 %v90
  %v127 = vunpack.c.l.b16 %v91
  %v128 = vunpack.c.l.b16 %v92
  %v129 = vpack.c.b16 %v114, %v113
  %v130 = vpack.c.b16 %v116, %v115
  %v131 = vpack.c.b16 %v118, %v117
  %v132 = vpack.c.b16 %v120, %v119
  %v133 = vpack.c.b16 %v122, %v121
  %v134 = vpack.c.b16 %v124, %v123
  %v135 = vpack.c.b16 %v126, %v125
  %v136 = vpack.c.b16 %v128, %v127
  %145 = vmatpush.bf16.msra.mxu0 %v136
  %146 = vmatpush.bf16.msra.mxu0 %v135
  %147 = vmatpush.bf16.msra.mxu0 %v134
  %148 = vmatpush.bf16.msra.mxu0 %v133
  %149 = vmatpush.bf16.msra.mxu0 %v132
  %150 = vmatpush.bf16.msra.mxu0 %v131
  %151 = vmatpush.bf16.msra.mxu0 %v130
  %152 = vmatpush.bf16.msra.mxu0 %v129
  %153 = vmatmul.bf16.gmra.mxu0 %v76
  %v154 = vpop.f32.mrf.mxu0
  %v155 = vadd.f32 %v95, %v154
  %v156 = vpop.f32.mrf.mxu0
  %v157 = vadd.f32 %v95, %v156
  %158 = vdwg.mxu0
  %v159 = vmax.f32 %v155, 0.0
  %v160 = vmax.f32 %v157, 0.0
  %v161 = vpack.c.bf16 %v160, %v159
  %v162 = vld [vmem:[%s5] sm:$0xf]
  %v163 = vld [vmem:[%s5 + $0x4] sm:$0xf]
  %v164 = vld [vmem:[%s5 + $0x8] sm:$0xf]
  %v165 = vld [vmem:[%s5 + $0xc] sm:$0xf]
  %v166 = vld [vmem:[%s5 + $0x10] sm:$0xf]
  %v167 = vld [vmem:[%s5 + $0x14] sm:$0xf]
  %v168 = vld [vmem:[%s5 + $0x18] sm:$0xf]
  %v169 = vld [vmem:[%s5 + $0x1c] sm:$0xf]
  %v170 = vld [vmem:[%s5 + $0x20] sm:$0xf]
  %v171 = vld [vmem:[%s5 + $0x24] sm:$0xf]
  %v172 = vld [vmem:[%s5 + $0x28] sm:$0xf]
  %v173 = vld [vmem:[%s5 + $0x2c] sm:$0xf]
  %v174 = vld [vmem:[%s5 + $0x30] sm:$0xf]
  %v175 = vld [vmem:[%s5 + $0x34] sm:$0xf]
  %v176 = vld [vmem:[%s5 + $0x38] sm:$0xf]
  %v177 = vld [vmem:[%s5 + $0x3c] sm:$0xf]
  %v178 = vld [vmem:[%s6] sm:$0x1]
  %v180 = vperm.slane %v178, 0
  %v198 = vunpack.c.l.b16 %v162
  %v199 = vunpack.c.l.b16 %v163
  %v200 = vunpack.c.l.b16 %v164
  %v201 = vunpack.c.l.b16 %v165
  %v202 = vunpack.c.l.b16 %v166
  %v203 = vunpack.c.l.b16 %v167
  %v204 = vunpack.c.l.b16 %v168
  %v205 = vunpack.c.l.b16 %v169
  %v206 = vunpack.c.l.b16 %v170
  %v207 = vunpack.c.l.b16 %v171
  %v208 = vunpack.c.l.b16 %v172
  %v209 = vunpack.c.l.b16 %v173
  %v210 = vunpack.c.l.b16 %v174
  %v211 = vunpack.c.l.b16 %v175
  %v212 = vunpack.c.l.b16 %v176
  %v213 = vunpack.c.l.b16 %v177
  %v214 = vpack.c.b16 %v199, %v198
  %v215 = vpack.c.b16 %v201, %v200
  %v216 = vpack.c.b16 %v203, %v202
  %v217 = vpack.c.b16 %v205, %v204
  %v218 = vpack.c.b16 %v207, %v206
  %v219 = vpack.c.b16 %v209, %v208
  %v220 = vpack.c.b16 %v211, %v210
  %v221 = vpack.c.b16 %v213, %v212
  %230 = vmatpush.bf16.msra.mxu0 %v221
  %231 = vmatpush.bf16.msra.mxu0 %v220
  %232 = vmatpush.bf16.msra.mxu0 %v219
  %233 = vmatpush.bf16.msra.mxu0 %v218
  %234 = vmatpush.bf16.msra.mxu0 %v217
  %235 = vmatpush.bf16.msra.mxu0 %v216
  %236 = vmatpush.bf16.msra.mxu0 %v215
  %237 = vmatpush.bf16.msra.mxu0 %v214
  %238 = vmatmul.bf16.gmra.mxu0 %v161
  %v239 = vpop.f32.mrf.mxu0
  %v240 = vadd.f32 %v180, %v239
  %v241 = vpop.f32.mrf.mxu0
  %v242 = vadd.f32 %v180, %v241
  %243 = vdwg.mxu0
  %v244 = vmax.f32 %v240, 0.0
  %v245 = vmax.f32 %v242, 0.0
  %v246 = vpack.c.bf16 %v245, %v244
  %v247 = vld [vmem:[%s7] sm:$0xf]
  %v248 = vld [vmem:[%s7 + $0x4] sm:$0xf]
  %v249 = vld [vmem:[%s7 + $0x8] sm:$0xf]
  %v250 = vld [vmem:[%s7 + $0xc] sm:$0xf]
  %v251 = vld [vmem:[%s7 + $0x10] sm:$0xf]
  %v252 = vld [vmem:[%s7 + $0x14] sm:$0xf]
  %v253 = vld [vmem:[%s7 + $0x18] sm:$0xf]
  %v254 = vld [vmem:[%s7 + $0x1c] sm:$0xf]
  %v255 = vld [vmem:[%s7 + $0x20] sm:$0xf]
  %v256 = vld [vmem:[%s7 + $0x24] sm:$0xf]
  %v257 = vld [vmem:[%s7 + $0x28] sm:$0xf]
  %v258 = vld [vmem:[%s7 + $0x2c] sm:$0xf]
  %v259 = vld [vmem:[%s7 + $0x30] sm:$0xf]
  %v260 = vld [vmem:[%s7 + $0x34] sm:$0xf]
  %v261 = vld [vmem:[%s7 + $0x38] sm:$0xf]
  %v262 = vld [vmem:[%s7 + $0x3c] sm:$0xf]
  %v263 = vld [vmem:[%s8] sm:$0x1]
  %v265 = vperm.slane %v263, 0
  %v283 = vunpack.c.l.b16 %v247
  %v284 = vunpack.c.l.b16 %v248
  %v285 = vunpack.c.l.b16 %v249
  %v286 = vunpack.c.l.b16 %v250
  %v287 = vunpack.c.l.b16 %v251
  %v288 = vunpack.c.l.b16 %v252
  %v289 = vunpack.c.l.b16 %v253
  %v290 = vunpack.c.l.b16 %v254
  %v291 = vunpack.c.l.b16 %v255
  %v292 = vunpack.c.l.b16 %v256
  %v293 = vunpack.c.l.b16 %v257
  %v294 = vunpack.c.l.b16 %v258
  %v295 = vunpack.c.l.b16 %v259
  %v296 = vunpack.c.l.b16 %v260
  %v297 = vunpack.c.l.b16 %v261
  %v298 = vunpack.c.l.b16 %v262
  %v299 = vpack.c.b16 %v284, %v283
  %v300 = vpack.c.b16 %v286, %v285
  %v301 = vpack.c.b16 %v288, %v287
  %v302 = vpack.c.b16 %v290, %v289
  %v303 = vpack.c.b16 %v292, %v291
  %v304 = vpack.c.b16 %v294, %v293
  %v305 = vpack.c.b16 %v296, %v295
  %v306 = vpack.c.b16 %v298, %v297
  %315 = vmatpush.bf16.msra.mxu0 %v306
  %316 = vmatpush.bf16.msra.mxu0 %v305
  %317 = vmatpush.bf16.msra.mxu0 %v304
  %318 = vmatpush.bf16.msra.mxu0 %v303
  %319 = vmatpush.bf16.msra.mxu0 %v302
  %320 = vmatpush.bf16.msra.mxu0 %v301
  %321 = vmatpush.bf16.msra.mxu0 %v300
  %322 = vmatpush.bf16.msra.mxu0 %v299
  %323 = vmatmul.bf16.gmra.mxu0 %v246
  %v324 = vpop.f32.mrf.mxu0
  %v325 = vadd.f32 %v265, %v324
  %v326 = vpop.f32.mrf.mxu0
  %v327 = vadd.f32 %v265, %v326
  %328 = vdwg.mxu0
  %vm329 = vcmask 80896
  %330 = vst.msk [vmem:[%s9] sm:$0xff] %vm329, %v325
  %331 = vst.msk [vmem:[%s9 + $0x8] sm:$0xff] %vm329, %v327
  // Predicated region
  $region38: #{neural_net_forward.1} parent=0 // pred_check
    _
  $region39: #{neural_net_forward.1} parent=0 // pred_check_branch
    %333 = sbr.rel (0) target = $region41
  $region40: #{neural_net_forward.1} parent=0 // pred_region
    _
  $region41: #{neural_net_forward.1} parent=0 // pred_fallthru
    _
  // Predicated region
  $region42: #{neural_net_forward.1} parent=0 // pred_check
    _
  $region43: #{neural_net_forward.1} parent=0 // pred_check_branch
    %335 = sbr.rel (0) target = $region45
  $region44: #{neural_net_forward.1} parent=0 // pred_region
    _
  $region45: #{neural_net_forward.1} parent=0 // pred_fallthru
    _

</llo_original>
